<compile_context>
chip_gen: v6e
topology: v6e:2x2x1
jax: 0.10.0
libtpu: 0.0.40
codegen_flags: <defaults>
</compile_context>

<pallas_src>
import functools

import jax
import jax.numpy as jnp
from jax.experimental import pallas as pl
from jax.experimental.pallas import tpu as pltpu


def sublayer_connection_kernel(x_ref, w_ref, bias_ref, seed_ref, o_ref, *,
                               eps, d_true, dropout_p, training):
    x = x_ref[...].astype(jnp.float32)                       # (T, Dp)

    # --- LayerNorm statistics (torch semantics: unbiased var, eps on std) ---
    # Padded feature columns of x are zero, so sums over the padded block are
    # identical to sums over the true D columns; d_true is the real d_model.
    inv_d = 1.0 / d_true
    mean = jnp.sum(x, axis=-1, keepdims=True) * inv_d
    sumsq = jnp.sum(x * x, axis=-1, keepdims=True)
    var = (sumsq - d_true * mean * mean) * (1.0 / max(d_true - 1.0, 1.0))
    std = jnp.sqrt(jnp.maximum(var, 0.0))
    inv_std = pl.reciprocal(std + eps, approx=True)           # EUP, not VALU

    # Affine (a_2, b_2) is folded into w_ref / bias_ref by the wrapper.
    z = ((x - mean) * inv_std).astype(jnp.bfloat16)

    # --- sublayer: dense projection on the MXU (bf16 x bf16 -> f32) ---
    y = jnp.dot(z, w_ref[...], preferred_element_type=jnp.float32)
    y = y + bias_ref[...]

    # --- dropout (inverted scaling); identity in eval mode ---
    if training and dropout_p > 0.0:
        pltpu.prng_seed(seed_ref[0] + pl.program_id(0))
        bits = pltpu.prng_random_bits(y.shape)
        if bits.dtype != jnp.uint32:
            bits = pltpu.bitcast(bits, jnp.uint32)
        thresh = jnp.uint32(min(int(dropout_p * 4294967296.0), 4294967295))
        scale = jnp.float32(1.0 / (1.0 - dropout_p))
        y = y * jnp.where(bits >= thresh, scale, jnp.float32(0.0))

    # --- residual add: re-read x from the resident VMEM block ---
    o_ref[...] = (x_ref[...].astype(jnp.float32) + y).astype(o_ref.dtype)


def sublayer_connection(x, a2, b2, w, bw, *, eps=1e-6, dropout_p=0.1,
                        training=False, seed=0, row_tile=256):
    """x: (B, S, D). a2/b2: LayerNorm params (D,). w: (D, D), bw: (D,)."""
    B, S, D = x.shape
    rows = B * S

    # Fold the LayerNorm affine into the dense layer (mathematically exact).
    w32 = w.astype(jnp.float32)
    w_fused = a2.astype(jnp.float32)[:, None] * w32
    bias_fused = b2.astype(jnp.float32) @ w32 + bw.astype(jnp.float32)

    # Lane-dense feature dim (multiple of 128); row tile adapts to the
    # problem so tiny inputs are not padded up to 256 rows of dead work.
    Dp = ((D + 127) // 128) * 128
    row_tile = max(8, min(row_tile, ((rows + 7) // 8) * 8))
    rows_p = pl.cdiv(rows, row_tile) * row_tile

    xf = x.reshape(rows, D)
    if Dp != D or rows_p != rows:
        xf = jnp.pad(xf, ((0, rows_p - rows), (0, Dp - D)))
    if Dp != D:
        w_fused = jnp.pad(w_fused, ((0, Dp - D), (0, Dp - D)))
        bias_fused = jnp.pad(bias_fused, (0, Dp - D))

    w_bf16 = w_fused.astype(jnp.bfloat16)          # bf16, pre-cast once
    bias_r = bias_fused.reshape(1, Dp)
    seed_arr = jnp.array([seed], dtype=jnp.int32)

    kernel = functools.partial(
        sublayer_connection_kernel, eps=float(eps), d_true=float(D),
        dropout_p=float(dropout_p), training=bool(training))

    itemsize = jnp.dtype(x.dtype).itemsize
    # Budget: double-buffered x + out tiles, (up to) double-buffered bf16
    # weight, params, plus headroom. Clamp to v7x's 64 MiB per-TC VMEM.
    # TODO(synk): for very large d_model on v7x, tile the weight over N/K
    # instead of holding the full (Dp, Dp) block resident.
    vmem_bytes = (2 * row_tile * Dp * itemsize) * 2 + 2 * Dp * Dp * 2 + 8 * Dp * 4
    vmem_bytes = min(vmem_bytes + (4 << 20), 64 << 20)

    out = pl.pallas_call(
        kernel,
        out_shape=jax.ShapeDtypeStruct((rows_p, Dp), x.dtype),
        grid=(rows_p // row_tile,),
        in_specs=[
            pl.BlockSpec((row_tile, Dp), lambda i: (i, 0)),      # x rows
            pl.BlockSpec((Dp, Dp), lambda i: (0, 0)),            # fused W (bf16)
            pl.BlockSpec((1, Dp), lambda i: (0, 0)),             # fused bias
            pl.BlockSpec(memory_space=pltpu.MemorySpace.SMEM),   # dropout seed
        ],
        out_specs=pl.BlockSpec((row_tile, Dp), lambda i: (i, 0)),
        compiler_params=pltpu.CompilerParams(
            dimension_semantics=("parallel",),
            vmem_limit_bytes=int(vmem_bytes)),
    )(xf, w_bf16, bias_r, seed_arr)

    return out[:rows, :D].reshape(B, S, D)


def reference(x, a2, b2, w, bw, eps=1e-6):
    """Pure-JAX f32 reference (dropout is identity in eval mode)."""
    x32 = x.astype(jnp.float32)
    D = x.shape[-1]
    mean = x32.mean(-1, keepdims=True)
    std = jnp.sqrt(((x32 - mean) ** 2).sum(-1, keepdims=True) / (D - 1))
    xn = a2 * (x32 - mean) / (std + eps) + b2
    y = xn @ w.astype(jnp.float32) + bw
    return (x32 + y).astype(x.dtype)


if __name__ == "__main__":
    B, S, D = 2, 8, 128          # batch, seq, d_model ("size")
    key = jax.random.PRNGKey(0)
    kx, kw, kb, ka, kb2 = jax.random.split(key, 5)

    x = jax.random.normal(kx, (B, S, D), dtype=jnp.float32)

    # LayerNorm parameters (module inits to ones/zeros; perturb slightly to
    # also exercise the affine-folding path).
    a2 = 1.0 + 0.1 * jax.random.normal(ka, (D,), dtype=jnp.float32)
    b2 = 0.1 * jax.random.normal(kb2, (D,), dtype=jnp.float32)

    # Deterministic parameters for the sublayer (a dense D->D projection).
    w = jax.random.normal(kw, (D, D), dtype=jnp.float32) * 0.05
    bw = jax.random.normal(kb, (D,), dtype=jnp.float32) * 0.05

    out = sublayer_connection(x, a2, b2, w, bw, dropout_p=0.1, training=False)
    out = jax.block_until_ready(out)

    ref = reference(x, a2, b2, w, bw)
    assert out.shape == (B, S, D)
    # Tolerance accounts for bf16 MXU matmul and the approximate reciprocal.
    assert jnp.allclose(out, ref, atol=1e-2, rtol=1e-2), "mismatch vs reference"

    print("KERNEL_OK")
</pallas_src>

<mosaic_0001>
module attributes {stable_mosaic.version = 11 : i64} {
  func.func @sublayer_connection_kernel(%arg0: i32, %arg1: memref<16x128xf32, #tpu.memory_space<vmem>>, %arg2: memref<128x128xbf16, #tpu.memory_space<vmem>>, %arg3: memref<1x128xf32, #tpu.memory_space<vmem>>, %arg4: memref<1xi32, #tpu.memory_space<smem>>, %arg5: memref<16x128xf32, #tpu.memory_space<vmem>>) attributes {dimension_semantics = [#tpu.dimension_semantics<parallel>], iteration_bounds = array<i64: 1>, scalar_prefetch = 0 : i64, scratch_operands = 0 : i64, tpu.core_type = #tpu.core_type<tc>, window_params = [{transform_indices = @transform_0, window_bounds = array<i64: 16, 128>}, {pipeline_mode = #tpu.pipeline_mode<synchronous>, transform_indices = @transform_1, window_bounds = array<i64: 128, 128>}, {pipeline_mode = #tpu.pipeline_mode<synchronous>, transform_indices = @transform_2, window_bounds = array<i64: 1, 128>}, {transform_indices = @transform_3, window_bounds = array<i64: 1>}, {transform_indices = @transform_4, window_bounds = array<i64: 16, 128>}]} {
    %c0 = arith.constant 0 : index
    %c0_0 = arith.constant 0 : index
    %0 = vector.load %arg1[%c0, %c0_0] : memref<16x128xf32, #tpu.memory_space<vmem>>, vector<16x128xf32>
    %cst = arith.constant dense<0.000000e+00> : vector<16xf32>
    %1 = vector.multi_reduction <add>, %0, %cst [1] : vector<16x128xf32> to vector<16xf32>
    %2 = vector.shape_cast %1 : vector<16xf32> to vector<16x1xf32>
    %cst_1 = arith.constant 7.812500e-03 : f32
    %3 = vector.broadcast %cst_1 : f32 to vector<16x1xf32>
    %4 = arith.mulf %2, %3 : vector<16x1xf32>
    %5 = arith.mulf %0, %0 : vector<16x128xf32>
    %cst_2 = arith.constant dense<0.000000e+00> : vector<16xf32>
    %6 = vector.multi_reduction <add>, %5, %cst_2 [1] : vector<16x128xf32> to vector<16xf32>
    %7 = vector.shape_cast %6 : vector<16xf32> to vector<16x1xf32>
    %cst_3 = arith.constant 1.280000e+02 : f32
    %8 = vector.broadcast %cst_3 : f32 to vector<16x1xf32>
    %9 = arith.mulf %8, %4 : vector<16x1xf32>
    %10 = arith.mulf %9, %4 : vector<16x1xf32>
    %11 = arith.subf %7, %10 : vector<16x1xf32>
    %cst_4 = arith.constant 0.00787401571 : f32
    %12 = vector.broadcast %cst_4 : f32 to vector<16x1xf32>
    %13 = arith.mulf %11, %12 : vector<16x1xf32>
    %cst_5 = arith.constant 0.000000e+00 : f32
    %14 = vector.broadcast %cst_5 : f32 to vector<16x1xf32>
    %15 = arith.maximumf %13, %14 : vector<16x1xf32>
    %16 = math.sqrt %15 : vector<16x1xf32>
    %cst_6 = arith.constant 9.99999997E-7 : f32
    %17 = vector.broadcast %cst_6 : f32 to vector<16x1xf32>
    %18 = arith.addf %16, %17 : vector<16x1xf32>
    %19 = tpu.reciprocal %18 {approx = true} : vector<16x1xf32> -> vector<16x1xf32>
    %20 = vector.broadcast %4 : vector<16x1xf32> to vector<16x128xf32>
    %21 = arith.subf %0, %20 : vector<16x128xf32>
    %22 = vector.broadcast %19 : vector<16x1xf32> to vector<16x128xf32>
    %23 = arith.mulf %21, %22 : vector<16x128xf32>
    %24 = arith.truncf %23 : vector<16x128xf32> to vector<16x128xbf16>
    %c0_7 = arith.constant 0 : index
    %c0_8 = arith.constant 0 : index
    %25 = vector.load %arg2[%c0_7, %c0_8] : memref<128x128xbf16, #tpu.memory_space<vmem>>, vector<128x128xbf16>
    %cst_9 = arith.constant dense<0.000000e+00> : vector<16x128xf32>
    %26 = tpu.matmul %24, %25, %cst_9 {dimension_numbers = #tpu.dot_dimension_numbers<[1], [0], [0], [1], [0, 0, 1, 1], [], []>} : vector<16x128xbf16>, vector<128x128xbf16>, vector<16x128xf32> -> vector<16x128xf32>
    %c0_10 = arith.constant 0 : index
    %c0_11 = arith.constant 0 : index
    %27 = vector.load %arg3[%c0_10, %c0_11] : memref<1x128xf32, #tpu.memory_space<vmem>>, vector<1x128xf32>
    %28 = vector.broadcast %27 : vector<1x128xf32> to vector<16x128xf32>
    %29 = arith.addf %26, %28 : vector<16x128xf32>
    %c0_12 = arith.constant 0 : index
    %c0_13 = arith.constant 0 : index
    %30 = vector.load %arg1[%c0_12, %c0_13] : memref<16x128xf32, #tpu.memory_space<vmem>>, vector<16x128xf32>
    %31 = arith.addf %30, %29 : vector<16x128xf32>
    %c0_14 = arith.constant 0 : index
    %c0_15 = arith.constant 0 : index
    %32 = vector.load %arg5[%c0_14, %c0_15] : memref<16x128xf32, #tpu.memory_space<vmem>>, vector<16x128xf32>
    tpu.vector_store %arg5[%c0_14, %c0_15], %31 {strides = array<i32>} : memref<16x128xf32, #tpu.memory_space<vmem>>, vector<16x128xf32>,
    return
  }
  func.func @transform_0(%arg0: i32) -> (i32, i32) {
    %c0_i32 = arith.constant 0 : i32
    %c0_i32_0 = arith.constant 0 : i32
    return %arg0, %c0_i32 : i32, i32
  }
  func.func @transform_1(%arg0: i32) -> (i32, i32) {
    %c0_i32 = arith.constant 0 : i32
    %c0_i32_0 = arith.constant 0 : i32
    %c0_i32_1 = arith.constant 0 : i32
    return %c0_i32, %c0_i32_0 : i32, i32
  }
  func.func @transform_2(%arg0: i32) -> (i32, i32) {
    %c0_i32 = arith.constant 0 : i32
    %c0_i32_0 = arith.constant 0 : i32
    %c0_i32_1 = arith.constant 0 : i32
    return %c0_i32, %c0_i32_0 : i32, i32
  }
  func.func @transform_3(%arg0: i32) -> i32 {
    %c0_i32 = arith.constant 0 : i32
    %c0_i32_0 = arith.constant 0 : i32
    return %c0_i32 : i32
  }
  func.func @transform_4(%arg0: i32) -> (i32, i32) {
    %c0_i32 = arith.constant 0 : i32
    %c0_i32_0 = arith.constant 0 : i32
    return %arg0, %c0_i32 : i32, i32
  }
}

</mosaic_0001>

<llo_original>
// kernel: tpu_custom_call.1
$region0: #{tpu_custom_call.1}
  #allocation0 [shape = 'u32[]', space=smem, size = 0x4, offset = 0x4, fixed_abs, tag = 'smem constant byte address 0x4 - core index']
  #allocation1 [shape = 'u32[144,128]{1,0:T(1,128)}', space=vmem, size = 0x12000, scoped, tag = 'internal scratch']
  #allocation2 [shape = 's32[1]{0:T(128)S(6)}', space=smem, size = 0x200, scoped, tag = 'scoped memory for tpu_custom_call.1']
  %s0 = inlined_call_operand.hbm [shape: f32[16,128], index: 0, kind: input, shape index: {}]
  %s1 = inlined_call_operand.hbm [shape: bf16[128,128], index: 1, kind: input, shape index: {}]
  %s2 = inlined_call_operand.vmem [shape: f32[1,128], index: 2, kind: input, shape index: {}]
  %s3 = inlined_call_operand.<no memory space> [shape: s32[1], index: 3, kind: input, shape index: {}]
  %s4 = inlined_call_operand.hbm [shape: f32[16,128], index: 4, kind: output, shape index: {}]
  %s5 = sld [smem:[#allocation0]]
  $region34: #{tpu_custom_call.1} parent=0
    _
  %s7 = ssub.s32 1, %s5
  %s8 = scalar_select 0, %s7, %s5
  %9 = sst [smem:[#allocation2]] %s3
  $region1: #{tpu_custom_call.1} parent=0
    #allocation3 [shape = 'u8[8192]{0}', space=vmem, size = 0x2000, scoped, tag = 'input window, operand 0, single buffered']
    #allocation4 [shape = 's32[1]{0}', space=sflag, size = 0x4, scoped, tag = 'scoped memory for tpu_custom_call.1']
    #allocation5 [shape = 's32[1]{0}', space=sflag, size = 0x4, scoped, tag = 'scoped memory for tpu_custom_call.1']
    #allocation6 [shape = 'u8[32768]{0}', space=vmem, size = 0x8000, scoped, tag = 'input window, operand 1, single buffered']
    #allocation7 [shape = 's32[1]{0}', space=sflag, size = 0x4, scoped, tag = 'scoped memory for tpu_custom_call.1']
    #allocation8 [shape = 'u8[8192]{0}', space=vmem, size = 0x2000, scoped, tag = 'output window, operand 0, single buffered']
    %10 = vsyncpa [#allocation4], 0
    %11 = vsyncpa [#allocation7], 0
    %12 = vsyncpa [#allocation5], 0
    // Predicated region
    $region2: #{tpu_custom_call.1} parent=1 // pred_check
      _
    $region3: #{tpu_custom_call.1} parent=1 // pred_check_branch
      %14 = sbr.rel (0) target = $region5
    $region4: #{tpu_custom_call.1} parent=1 // pred_region
      %s16 = ssub.s32 256, 256
      %17 = vsyncadd [#allocation4], %s16
      %s18 = sshll.u32 [#allocation3], 4
      %s19 = int_to_ptr.vmem [resolvable:$true] %s18
      %24 = dma.hbm_to_vmem [thread:$0]  %s0, 256, %s19, [#allocation4], 128, 128, 8
    $region5: #{tpu_custom_call.1} parent=1 // pred_fallthru
      _
    // Predicated region
    $region6: #{tpu_custom_call.1} parent=1 // pred_check
      _
    $region7: #{tpu_custom_call.1} parent=1 // pred_check_branch
      %26 = sbr.rel (0) target = $region9
    $region8: #{tpu_custom_call.1} parent=1 // pred_region
      %s28 = ssub.s32 1024, 1024
      %29 = vsyncadd [#allocation7], %s28
      %s30 = sshll.u32 [#allocation6], 4
      %s31 = int_to_ptr.vmem [resolvable:$true] %s30
      %36 = dma.hbm_to_vmem [thread:$0]  %s1, 1024, %s31, [#allocation7], 64, 64, 4
    $region9: #{tpu_custom_call.1} parent=1 // pred_fallthru
      _
    // Predicated region
    $region10: #{tpu_custom_call.1} parent=1 // pred_check
      _
    $region11: #{tpu_custom_call.1} parent=1 // pred_check_branch
      %38 = sbr.rel (0) target = $region13
    $region12: #{tpu_custom_call.1} parent=1 // pred_region
      _
    $region13: #{tpu_custom_call.1} parent=1 // pred_fallthru
      _
    // Predicated region
    $region14: #{tpu_custom_call.1} parent=1 // pred_check
      _
    $region15: #{tpu_custom_call.1} parent=1 // pred_check_branch
      %40 = sbr.rel (0) target = $region17
    $region16: #{tpu_custom_call.1} parent=1 // pred_region
      _
    $region17: #{tpu_custom_call.1} parent=1 // pred_fallthru
      _
    // Predicated region
    $region18: #{tpu_custom_call.1} parent=1 // pred_check
      _
    $region19: #{tpu_custom_call.1} parent=1 // pred_check_branch
      %42 = sbr.rel (0) target = $region21
    $region20: #{tpu_custom_call.1} parent=1 // pred_region
      %43 = dma.done [#allocation4], 256
    $region21: #{tpu_custom_call.1} parent=1 // pred_fallthru
      _
    // Predicated region
    $region22: #{tpu_custom_call.1} parent=1 // pred_check
      _
    $region23: #{tpu_custom_call.1} parent=1 // pred_check_branch
      %45 = sbr.rel (0) target = $region25
    $region24: #{tpu_custom_call.1} parent=1 // pred_region
      %46 = dma.done [#allocation7], 1024
    $region25: #{tpu_custom_call.1} parent=1 // pred_fallthru
      _
    %v48 = vld [vmem:[#allocation3] sm:$0xff]
    %v49 = vld [vmem:[#allocation3 + $0x8] sm:$0xff]
    %50 = vadd.xlane.f32.xlu0 %v48
    %v51 = vpop.xlane.xlu0 %50
    %52 = vadd.xlane.f32.xlu0 %v49
    %v53 = vpop.xlane.xlu0 %52
    %v54 = vmul.f32 %v51, 0.0078125
    %v55 = vmul.f32 %v53, 0.0078125
    %v56 = vmul.f32 %v48, %v48
    %v57 = vmul.f32 %v49, %v49
    %58 = vadd.xlane.f32.xlu0 %v56
    %v59 = vpop.xlane.xlu0 %58
    %60 = vadd.xlane.f32.xlu0 %v57
    %v61 = vpop.xlane.xlu0 %60
    %v62 = vmul.f32 %v54, 128.0
    %v63 = vmul.f32 %v55, 128.0
    %v64 = vmul.f32 %v62, %v54
    %v65 = vmul.f32 %v63, %v55
    %v66 = vsub.f32 %v59, %v64
    %v67 = vsub.f32 %v61, %v65
    %v68 = vmul.f32 %v66, 0.007874016
    %v69 = vmul.f32 %v67, 0.007874016
    %v70 = vmax.f32 %v68, 0.0
    %v71 = vmax.f32 %v69, 0.0
    %v72 = vrsqrt.pop %v70
    %v73 = vmul.f32 %v70, %v72
    %vm74 = vcmp.eq.f32.partialorder %v70, inf
    %v75 = vsel %vm74, %v70, %v73
    %vm76 = vcmp.eq.f32.partialorder %v70, 0.0
    %v77 = vand.u32 %v70, 2147483648
    %v78 = vsel %vm76, %v77, %v75
    %v79 = vrsqrt.pop %v71
    %v80 = vmul.f32 %v71, %v79
    %vm81 = vcmp.eq.f32.partialorder %v71, inf
    %v82 = vsel %vm81, %v71, %v80
    %vm83 = vcmp.eq.f32.partialorder %v71, 0.0
    %v84 = vand.u32 %v71, 2147483648
    %v85 = vsel %vm83, %v84, %v82
    %v86 = vadd.f32 %v78, 1e-06
    %v87 = vadd.f32 %v85, 1e-06
    %v88 = vrcp.pop %v86
    %v89 = vrcp.pop %v87
    %v90 = vsub.f32 %v48, %v54
    %v91 = vsub.f32 %v49, %v55
    %v92 = vmul.f32 %v90, %v88
    %v93 = vmul.f32 %v91, %v89
    %v94 = vpack.c.bf16 %v93, %v92
    %v95 = vld [vmem:[#allocation6] sm:$0xf]
    %v96 = vld [vmem:[#allocation6 + $0x4] sm:$0xf]
    %v97 = vld [vmem:[#allocation6 + $0x8] sm:$0xf]
    %v98 = vld [vmem:[#allocation6 + $0xc] sm:$0xf]
    %v99 = vld [vmem:[#allocation6 + $0x10] sm:$0xf]
    %v100 = vld [vmem:[#allocation6 + $0x14] sm:$0xf]
    %v101 = vld [vmem:[#allocation6 + $0x18] sm:$0xf]
    %v102 = vld [vmem:[#allocation6 + $0x1c] sm:$0xf]
    %v103 = vld [vmem:[#allocation6 + $0x20] sm:$0xf]
    %v104 = vld [vmem:[#allocation6 + $0x24] sm:$0xf]
    %v105 = vld [vmem:[#allocation6 + $0x28] sm:$0xf]
    %v106 = vld [vmem:[#allocation6 + $0x2c] sm:$0xf]
    %v107 = vld [vmem:[#allocation6 + $0x30] sm:$0xf]
    %v108 = vld [vmem:[#allocation6 + $0x34] sm:$0xf]
    %v109 = vld [vmem:[#allocation6 + $0x38] sm:$0xf]
    %v110 = vld [vmem:[#allocation6 + $0x3c] sm:$0xf]
    %v111 = vld [vmem:[%s2] sm:$0x1]
    %v113 = vlaneseq
    %v114 = vshrl.u32 %v113, 7
    %v115 = vsub.s32 0, %v114
    %v116 = vrot.slane %v111, %v115
    %v134 = vunpack.c.l.b16 %v95
    %v135 = vunpack.c.l.b16 %v96
    %v136 = vunpack.c.l.b16 %v97
    %v137 = vunpack.c.l.b16 %v98
    %v138 = vunpack.c.l.b16 %v99
    %v139 = vunpack.c.l.b16 %v100
    %v140 = vunpack.c.l.b16 %v101
    %v141 = vunpack.c.l.b16 %v102
    %v142 = vunpack.c.l.b16 %v103
    %v143 = vunpack.c.l.b16 %v104
    %v144 = vunpack.c.l.b16 %v105
    %v145 = vunpack.c.l.b16 %v106
    %v146 = vunpack.c.l.b16 %v107
    %v147 = vunpack.c.l.b16 %v108
    %v148 = vunpack.c.l.b16 %v109
    %v149 = vunpack.c.l.b16 %v110
    %v150 = vpack.c.b16 %v135, %v134
    %v151 = vpack.c.b16 %v137, %v136
    %v152 = vpack.c.b16 %v139, %v138
    %v153 = vpack.c.b16 %v141, %v140
    %v154 = vpack.c.b16 %v143, %v142
    %v155 = vpack.c.b16 %v145, %v144
    %v156 = vpack.c.b16 %v147, %v146
    %v157 = vpack.c.b16 %v149, %v148
    %166 = vmatprep.subr.bf16.mxu0 0
    %167 = vmatpush1.bf16.msra.mxu0 %v157
    %168 = vmatprep.subr.bf16.mxu0 0
    %169 = vmatpush1.bf16.msra.mxu0 %v156
    %170 = vmatprep.subr.bf16.mxu0 0
    %171 = vmatpush1.bf16.msra.mxu0 %v155
    %172 = vmatprep.subr.bf16.mxu0 0
    %173 = vmatpush1.bf16.msra.mxu0 %v154
    %174 = vmatprep.subr.bf16.mxu0 0
    %175 = vmatpush1.bf16.msra.mxu0 %v153
    %176 = vmatprep.subr.bf16.mxu0 0
    %177 = vmatpush1.bf16.msra.mxu0 %v152
    %178 = vmatprep.subr.bf16.mxu0 0
    %179 = vmatpush1.bf16.msra.mxu0 %v151
    %180 = vmatprep.subr.bf16.mxu0 0
    %181 = vmatpush1.bf16.msra.mxu0 %v150
    %182 = vmatprep.subr.bf16.mxu0 0
    %183 = vmatpush2.bf16.msra.mxu0 0
    %184 = vmatprep.subr.bf16.mxu0 0
    %185 = vmatpush2.bf16.msra.mxu0 0
    %186 = vmatprep.subr.bf16.mxu0 0
    %187 = vmatpush2.bf16.msra.mxu0 0
    %188 = vmatprep.subr.bf16.mxu0 0
    %189 = vmatpush2.bf16.msra.mxu0 0
    %190 = vmatprep.subr.bf16.mxu0 0
    %191 = vmatpush2.bf16.msra.mxu0 0
    %192 = vmatprep.subr.bf16.mxu0 0
    %193 = vmatpush2.bf16.msra.mxu0 0
    %194 = vmatprep.subr.bf16.mxu0 0
    %195 = vmatpush2.bf16.msra.mxu0 0
    %196 = vmatprep.subr.bf16.mxu0 0
    %197 = vmatpush2.bf16.msra.mxu0 0
    %198 = vmatprep.mubr.bf16.mxu0 0
    %199 = vmatmul.mubr.bf16.gmra.mxu0 %v94
    %v200 = vpop.f32.mrf.mxu0
    %v201 = vadd.f32 %v116, %v200
    %v202 = vpop.f32.mrf.mxu0
    %v203 = vpop.f32.mrf.mxu0
    %v204 = vadd.f32 %v116, %v203
    %v205 = vpop.f32.mrf.mxu0
    %206 = vdwg.mxu0
    %v207 = vadd.f32 %v48, %v201
    %v208 = vadd.f32 %v49, %v204
    %209 = vst [vmem:[#allocation8] sm:$0xff] %v207
    %210 = vst [vmem:[#allocation8 + $0x8] sm:$0xff] %v208
    // Predicated region
    $region26: #{tpu_custom_call.1} parent=1 // pred_check
      _
    $region27: #{tpu_custom_call.1} parent=1 // pred_check_branch
      %212 = sbr.rel (0) target = $region29
    $region28: #{tpu_custom_call.1} parent=1 // pred_region
      %s214 = ssub.s32 256, 256
      %215 = vsyncadd [#allocation5], %s214
      %s216 = sshll.u32 [#allocation8], 4
      %s217 = int_to_ptr.vmem [resolvable:$true] %s216
      %222 = dma.vmem_to_hbm [thread:$0]  %s217, 256, %s4, [#allocation5], 128, 128, 8
    $region29: #{tpu_custom_call.1} parent=1 // pred_fallthru
      _
    // Predicated region
    $region30: #{tpu_custom_call.1} parent=1 // pred_check
      _
    $region31: #{tpu_custom_call.1} parent=1 // pred_check_branch
      %224 = sbr.rel (0) target = $region33
    $region32: #{tpu_custom_call.1} parent=1 // pred_region
      %225 = dma.done [#allocation5], 256
    $region33: #{tpu_custom_call.1} parent=1 // pred_fallthru
      _
    %226 = vsyncpa [#allocation4], 1
    %227 = vsyncpa [#allocation7], 1
    %228 = vsyncpa [#allocation5], 1

</llo_original>
